<compile_context>
chip_gen: v7x
topology: tpu7x:2x2x1
jax: 0.10.0
libtpu: 0.0.40
codegen_flags: <defaults>
</compile_context>

<pallas_src>
import functools
import numpy as np
import jax
import jax.numpy as jnp
from jax import lax
from jax.experimental import pallas as pl
from jax.experimental.pallas import tpu as pltpu

LANES = 128
MAX_TILE_R = 2048   # (2048, 128) f32 = 1 MiB per buffer
CHUNK_R = 64        # strip-mine chunk: (64, 128) f32 = 8 vregs per live array

_INV_SQRT2 = 0.7071067811865476
_INV_SQRT_2PI = 0.3989422804014327


def _cdiv(a, b):
  return -(-a // b)


def _round_up(v, m):
  return ((v + m - 1) // m) * m


def _make_flow1d_kernel(n_components, chunk_r, num_chunks):
  # Abramowitz & Stegun 7.1.26 erf coefficients (|abs err| <= 1.5e-7),
  # pre-scaled by 0.5 so the CDF's 0.5 factor is folded into the polynomial.
  p = 0.3275911
  h1, h2, h3, h4, h5 = (0.5 * 0.254829592, 0.5 * -0.284496736,
                        0.5 * 1.421413741, 0.5 * -1.453152027,
                        0.5 * 1.061405429)

  def kernel(mus_ref, inv_sigmas_ref, w_ref, pdf_scale_ref,
             x_ref, z_ref, logdz_ref):

    def process(r0):
      x = x_ref[pl.ds(r0, chunk_r), :]          # (chunk_r, 128) f32
      z_acc = jnp.zeros_like(x)
      p_acc = jnp.zeros_like(x)
      for k in range(n_components):             # K is tiny; static unroll
        mu = mus_ref[k]
        inv_sigma = inv_sigmas_ref[k]
        w = w_ref[k]
        pdf_scale = pdf_scale_ref[k]

        t = (x - mu) * inv_sigma
        # One transcendental shared by pdf and erf tail: exp(-t^2/2).
        e = jnp.exp(-0.5 * t * t)
        p_acc = p_acc + pdf_scale * e           # w_k * pdf_k(x)

        # erf tail via A&S 7.1.26 on s = |t|/sqrt(2), reusing e = exp(-s^2).
        s = jnp.abs(t) * _INV_SQRT2
        d = 1.0 + p * s
        r = pl.reciprocal(d, approx=True)       # EUP vrcp
        r = r * (2.0 - d * r)                   # one Newton step (~1e-7 rel)
        half_poly = ((((h5 * r + h4) * r + h3) * r + h2) * r + h1) * r
        q = (w * half_poly) * e                 # 0.5*w*(1 - erf(|t|/sqrt2)) tail
        # w_k * Phi(t) = w_k - q  (t >= 0)  or  q  (t < 0); branch-free select.
        z_acc = z_acc + jnp.where(t >= 0.0, w - q, q)

      z_ref[pl.ds(r0, chunk_r), :] = z_acc
      # Matches reference: underflowed mixture pdf -> log(0) = -inf.
      logdz_ref[pl.ds(r0, chunk_r), :] = jnp.log(p_acc)

    if num_chunks == 1:
      process(0)
    else:
      def body(c, carry):
        process(pl.multiple_of(c * chunk_r, chunk_r))
        return carry
      # fori_loop (not a Python for) bounds live ranges to one chunk.
      lax.fori_loop(0, num_chunks, body, 0,
                    unroll=True if num_chunks <= 4 else False)

  return kernel


@functools.partial(jax.jit, static_argnames=())
def flow1d_forward(x, mus, log_sigmas, weight_logits):
  """Returns (z, log_dz_by_dx), each of shape (x.size,) float32."""
  x_flat = jnp.ravel(x).astype(jnp.float32)
  n = x_flat.shape[0]

  # --- tile / chunk selection --------------------------------------------
  rows_needed = _cdiv(max(n, 1), LANES)
  if rows_needed <= CHUNK_R:
    # Tiny input: one tile, one chunk, no over-padding.
    chunk_r = _round_up(rows_needed, 8)
    tile_r = chunk_r
    num_tiles = 1
  else:
    chunk_r = CHUNK_R
    # Enough tiles to respect MAX_TILE_R, and >= 2 tiles once there is enough
    # work (>= 4 chunks) so both v7x TensorCores get a tile + pipelining.
    min_tiles = max(1, _cdiv(rows_needed, MAX_TILE_R))
    if rows_needed >= 4 * CHUNK_R:
      min_tiles = max(min_tiles, 2)
    # Balanced tile size (bounds padding to < 1 tile; no 2x padding cliff).
    tile_r = min(MAX_TILE_R, _round_up(_cdiv(rows_needed, min_tiles), chunk_r))
    num_tiles = _cdiv(rows_needed, tile_r)
  rows = num_tiles * tile_r
  num_chunks = tile_r // chunk_r

  n_pad = rows * LANES
  if n_pad != n:  # skip the HBM pad copy when already lane-aligned
    x_flat = jnp.pad(x_flat, (0, n_pad - n))
  x2d = x_flat.reshape(rows, LANES)

  # --- tiny per-component parameter prep (plain JAX glue) ------------------
  mus_f = mus.astype(jnp.float32)
  inv_sigmas = jnp.exp(-log_sigmas.astype(jnp.float32))          # 1 / sigma
  weights = jax.nn.softmax(weight_logits.astype(jnp.float32))
  pdf_scale = weights * _INV_SQRT_2PI * inv_sigmas               # w/(sqrt(2pi)*sigma)

  n_components = mus_f.shape[0]
  kernel = _make_flow1d_kernel(n_components, chunk_r, num_chunks)

  z2d, logdz2d = pl.pallas_call(
      kernel,
      out_shape=(jax.ShapeDtypeStruct((rows, LANES), jnp.float32),
                 jax.ShapeDtypeStruct((rows, LANES), jnp.float32)),
      grid=(num_tiles,),
      in_specs=[
          pl.BlockSpec(memory_space=pltpu.MemorySpace.SMEM),  # mus
          pl.BlockSpec(memory_space=pltpu.MemorySpace.SMEM),  # 1/sigma
          pl.BlockSpec(memory_space=pltpu.MemorySpace.SMEM),  # weights
          pl.BlockSpec(memory_space=pltpu.MemorySpace.SMEM),  # pdf scale
          pl.BlockSpec((tile_r, LANES), lambda i: (i, 0)),    # x tile
      ],
      out_specs=(
          pl.BlockSpec((tile_r, LANES), lambda i: (i, 0)),
          pl.BlockSpec((tile_r, LANES), lambda i: (i, 0)),
      ),
      compiler_params=pltpu.CompilerParams(
          dimension_semantics=("parallel",)),
  )(mus_f, inv_sigmas, weights, pdf_scale, x2d)

  if n_pad != n:
    z = z2d.reshape(-1)[:n]
    logdz = logdz2d.reshape(-1)[:n]
  else:  # skip the output slice copies when already aligned
    z = z2d.reshape(-1)
    logdz = logdz2d.reshape(-1)
  return z, logdz


def flow1d_reference(x, mus, log_sigmas, weight_logits):
  x_flat = jnp.ravel(x).astype(jnp.float32)[:, None]             # (N, 1)
  weights = jax.nn.softmax(weight_logits)[None, :]               # (1, K)
  sigmas = jnp.exp(log_sigmas)[None, :]
  mus = mus[None, :]
  t = (x_flat - mus) / sigmas
  cdf = 0.5 * (1.0 + jax.scipy.special.erf(t * _INV_SQRT2))
  pdf = jnp.exp(-0.5 * t * t) * (_INV_SQRT_2PI / sigmas)
  z = jnp.sum(cdf * weights, axis=1)
  logdz = jnp.log(jnp.sum(pdf * weights, axis=1))
  return z, logdz


if __name__ == "__main__":
  key = jax.random.PRNGKey(0)
  k_x, k_mu = jax.random.split(key)

  # Module parameters (deterministic init, matching shapes from __init__).
  n_components = 4
  mus = jax.random.normal(k_mu, (n_components,), dtype=jnp.float32)
  log_sigmas = jnp.zeros((n_components,), dtype=jnp.float32)
  weight_logits = jnp.ones((n_components,), dtype=jnp.float32)

  # Example input (flattened internally by forward, as in x.view(-1, 1)).
  x = jax.random.normal(k_x, (2, 4, 16, 16), dtype=jnp.float32)

  z, log_dz = flow1d_forward(x, mus, log_sigmas, weight_logits)
  jax.block_until_ready((z, log_dz))

  z_ref, log_dz_ref = flow1d_reference(x, mus, log_sigmas, weight_logits)
  np.testing.assert_allclose(np.asarray(z), np.asarray(z_ref),
                             atol=1e-4, rtol=1e-4)
  np.testing.assert_allclose(np.asarray(log_dz), np.asarray(log_dz_ref),
                             atol=1e-4, rtol=1e-4)

  print("KERNEL_OK")
</pallas_src>

<mosaic_0001>
module attributes {stable_mosaic.version = 11 : i64} {
  func.func @kernel(%arg0: i32, %arg1: memref<4xf32, #tpu.memory_space<smem>>, %arg2: memref<4xf32, #tpu.memory_space<smem>>, %arg3: memref<4xf32, #tpu.memory_space<smem>>, %arg4: memref<4xf32, #tpu.memory_space<smem>>, %arg5: memref<16x128xf32, #tpu.memory_space<vmem>>, %arg6: memref<16x128xf32, #tpu.memory_space<vmem>>, %arg7: memref<16x128xf32, #tpu.memory_space<vmem>>) attributes {dimension_semantics = [#tpu.dimension_semantics<parallel>], iteration_bounds = array<i64: 1>, scalar_prefetch = 0 : i64, scratch_operands = 0 : i64, tpu.core_type = #tpu.core_type<tc>, window_params = [{transform_indices = @transform_0, window_bounds = array<i64: 4>}, {transform_indices = @transform_1, window_bounds = array<i64: 4>}, {transform_indices = @transform_2, window_bounds = array<i64: 4>}, {transform_indices = @transform_3, window_bounds = array<i64: 4>}, {transform_indices = @transform_4, window_bounds = array<i64: 16, 128>}, {transform_indices = @transform_5, window_bounds = array<i64: 16, 128>}, {transform_indices = @transform_6, window_bounds = array<i64: 16, 128>}]} {
    %c0 = arith.constant 0 : index
    %c0_0 = arith.constant 0 : index
    %0 = vector.load %arg5[%c0, %c0_0] : memref<16x128xf32, #tpu.memory_space<vmem>>, vector<16x128xf32>
    %cst = arith.constant 0.000000e+00 : f32
    %1 = vector.broadcast %cst : f32 to vector<16x128xf32>
    %cst_1 = arith.constant 0.000000e+00 : f32
    %2 = vector.broadcast %cst_1 : f32 to vector<16x128xf32>
    %c0_2 = arith.constant 0 : index
    %3 = memref.load %arg1[%c0_2] : memref<4xf32, #tpu.memory_space<smem>>
    %c0_3 = arith.constant 0 : index
    %4 = memref.load %arg2[%c0_3] : memref<4xf32, #tpu.memory_space<smem>>
    %c0_4 = arith.constant 0 : index
    %5 = memref.load %arg3[%c0_4] : memref<4xf32, #tpu.memory_space<smem>>
    %c0_5 = arith.constant 0 : index
    %6 = memref.load %arg4[%c0_5] : memref<4xf32, #tpu.memory_space<smem>>
    %7 = vector.broadcast %3 : f32 to vector<16x128xf32>
    %8 = arith.subf %0, %7 : vector<16x128xf32>
    %9 = vector.broadcast %4 : f32 to vector<16x128xf32>
    %10 = arith.mulf %8, %9 : vector<16x128xf32>
    %cst_6 = arith.constant -5.000000e-01 : f32
    %11 = vector.broadcast %cst_6 : f32 to vector<16x128xf32>
    %12 = arith.mulf %11, %10 : vector<16x128xf32>
    %13 = arith.mulf %12, %10 : vector<16x128xf32>
    %14 = math.exp %13 : vector<16x128xf32>
    %15 = vector.broadcast %6 : f32 to vector<16x128xf32>
    %16 = arith.mulf %15, %14 : vector<16x128xf32>
    %17 = arith.addf %2, %16 : vector<16x128xf32>
    %18 = math.absf %10 : vector<16x128xf32>
    %cst_7 = arith.constant 0.707106769 : f32
    %19 = vector.broadcast %cst_7 : f32 to vector<16x128xf32>
    %20 = arith.mulf %18, %19 : vector<16x128xf32>
    %cst_8 = arith.constant 0.327591091 : f32
    %21 = vector.broadcast %cst_8 : f32 to vector<16x128xf32>
    %22 = arith.mulf %21, %20 : vector<16x128xf32>
    %cst_9 = arith.constant 1.000000e+00 : f32
    %23 = vector.broadcast %cst_9 : f32 to vector<16x128xf32>
    %24 = arith.addf %23, %22 : vector<16x128xf32>
    %25 = tpu.reciprocal %24 {approx = true} : vector<16x128xf32> -> vector<16x128xf32>
    %26 = arith.mulf %24, %25 : vector<16x128xf32>
    %cst_10 = arith.constant 2.000000e+00 : f32
    %27 = vector.broadcast %cst_10 : f32 to vector<16x128xf32>
    %28 = arith.subf %27, %26 : vector<16x128xf32>
    %29 = arith.mulf %25, %28 : vector<16x128xf32>
    %cst_11 = arith.constant 0.53070271 : f32
    %30 = vector.broadcast %cst_11 : f32 to vector<16x128xf32>
    %31 = arith.mulf %30, %29 : vector<16x128xf32>
    %cst_12 = arith.constant -0.72657603 : f32
    %32 = vector.broadcast %cst_12 : f32 to vector<16x128xf32>
    %33 = arith.addf %31, %32 : vector<16x128xf32>
    %34 = arith.mulf %33, %29 : vector<16x128xf32>
    %cst_13 = arith.constant 0.710706889 : f32
    %35 = vector.broadcast %cst_13 : f32 to vector<16x128xf32>
    %36 = arith.addf %34, %35 : vector<16x128xf32>
    %37 = arith.mulf %36, %29 : vector<16x128xf32>
    %cst_14 = arith.constant -0.142248362 : f32
    %38 = vector.broadcast %cst_14 : f32 to vector<16x128xf32>
    %39 = arith.addf %37, %38 : vector<16x128xf32>
    %40 = arith.mulf %39, %29 : vector<16x128xf32>
    %cst_15 = arith.constant 0.127414793 : f32
    %41 = vector.broadcast %cst_15 : f32 to vector<16x128xf32>
    %42 = arith.addf %40, %41 : vector<16x128xf32>
    %43 = arith.mulf %42, %29 : vector<16x128xf32>
    %44 = vector.broadcast %5 : f32 to vector<16x128xf32>
    %45 = arith.mulf %44, %43 : vector<16x128xf32>
    %46 = arith.mulf %45, %14 : vector<16x128xf32>
    %cst_16 = arith.constant 0.000000e+00 : f32
    %47 = vector.broadcast %cst_16 : f32 to vector<16x128xf32>
    %48 = arith.cmpf oge, %10, %47 : vector<16x128xf32>
    %49 = vector.broadcast %5 : f32 to vector<16x128xf32>
    %50 = arith.subf %49, %46 : vector<16x128xf32>
    %51 = arith.select %48, %50, %46 : vector<16x128xi1>, vector<16x128xf32>
    %52 = arith.addf %1, %51 : vector<16x128xf32>
    %c1 = arith.constant 1 : index
    %53 = memref.load %arg1[%c1] : memref<4xf32, #tpu.memory_space<smem>>
    %c1_17 = arith.constant 1 : index
    %54 = memref.load %arg2[%c1_17] : memref<4xf32, #tpu.memory_space<smem>>
    %c1_18 = arith.constant 1 : index
    %55 = memref.load %arg3[%c1_18] : memref<4xf32, #tpu.memory_space<smem>>
    %c1_19 = arith.constant 1 : index
    %56 = memref.load %arg4[%c1_19] : memref<4xf32, #tpu.memory_space<smem>>
    %57 = vector.broadcast %53 : f32 to vector<16x128xf32>
    %58 = arith.subf %0, %57 : vector<16x128xf32>
    %59 = vector.broadcast %54 : f32 to vector<16x128xf32>
    %60 = arith.mulf %58, %59 : vector<16x128xf32>
    %cst_20 = arith.constant -5.000000e-01 : f32
    %61 = vector.broadcast %cst_20 : f32 to vector<16x128xf32>
    %62 = arith.mulf %61, %60 : vector<16x128xf32>
    %63 = arith.mulf %62, %60 : vector<16x128xf32>
    %64 = math.exp %63 : vector<16x128xf32>
    %65 = vector.broadcast %56 : f32 to vector<16x128xf32>
    %66 = arith.mulf %65, %64 : vector<16x128xf32>
    %67 = arith.addf %17, %66 : vector<16x128xf32>
    %68 = math.absf %60 : vector<16x128xf32>
    %cst_21 = arith.constant 0.707106769 : f32
    %69 = vector.broadcast %cst_21 : f32 to vector<16x128xf32>
    %70 = arith.mulf %68, %69 : vector<16x128xf32>
    %cst_22 = arith.constant 0.327591091 : f32
    %71 = vector.broadcast %cst_22 : f32 to vector<16x128xf32>
    %72 = arith.mulf %71, %70 : vector<16x128xf32>
    %cst_23 = arith.constant 1.000000e+00 : f32
    %73 = vector.broadcast %cst_23 : f32 to vector<16x128xf32>
    %74 = arith.addf %73, %72 : vector<16x128xf32>
    %75 = tpu.reciprocal %74 {approx = true} : vector<16x128xf32> -> vector<16x128xf32>
    %76 = arith.mulf %74, %75 : vector<16x128xf32>
    %cst_24 = arith.constant 2.000000e+00 : f32
    %77 = vector.broadcast %cst_24 : f32 to vector<16x128xf32>
    %78 = arith.subf %77, %76 : vector<16x128xf32>
    %79 = arith.mulf %75, %78 : vector<16x128xf32>
    %cst_25 = arith.constant 0.53070271 : f32
    %80 = vector.broadcast %cst_25 : f32 to vector<16x128xf32>
    %81 = arith.mulf %80, %79 : vector<16x128xf32>
    %cst_26 = arith.constant -0.72657603 : f32
    %82 = vector.broadcast %cst_26 : f32 to vector<16x128xf32>
    %83 = arith.addf %81, %82 : vector<16x128xf32>
    %84 = arith.mulf %83, %79 : vector<16x128xf32>
    %cst_27 = arith.constant 0.710706889 : f32
    %85 = vector.broadcast %cst_27 : f32 to vector<16x128xf32>
    %86 = arith.addf %84, %85 : vector<16x128xf32>
    %87 = arith.mulf %86, %79 : vector<16x128xf32>
    %cst_28 = arith.constant -0.142248362 : f32
    %88 = vector.broadcast %cst_28 : f32 to vector<16x128xf32>
    %89 = arith.addf %87, %88 : vector<16x128xf32>
    %90 = arith.mulf %89, %79 : vector<16x128xf32>
    %cst_29 = arith.constant 0.127414793 : f32
    %91 = vector.broadcast %cst_29 : f32 to vector<16x128xf32>
    %92 = arith.addf %90, %91 : vector<16x128xf32>
    %93 = arith.mulf %92, %79 : vector<16x128xf32>
    %94 = vector.broadcast %55 : f32 to vector<16x128xf32>
    %95 = arith.mulf %94, %93 : vector<16x128xf32>
    %96 = arith.mulf %95, %64 : vector<16x128xf32>
    %cst_30 = arith.constant 0.000000e+00 : f32
    %97 = vector.broadcast %cst_30 : f32 to vector<16x128xf32>
    %98 = arith.cmpf oge, %60, %97 : vector<16x128xf32>
    %99 = vector.broadcast %55 : f32 to vector<16x128xf32>
    %100 = arith.subf %99, %96 : vector<16x128xf32>
    %101 = arith.select %98, %100, %96 : vector<16x128xi1>, vector<16x128xf32>
    %102 = arith.addf %52, %101 : vector<16x128xf32>
    %c2 = arith.constant 2 : index
    %103 = memref.load %arg1[%c2] : memref<4xf32, #tpu.memory_space<smem>>
    %c2_31 = arith.constant 2 : index
    %104 = memref.load %arg2[%c2_31] : memref<4xf32, #tpu.memory_space<smem>>
    %c2_32 = arith.constant 2 : index
    %105 = memref.load %arg3[%c2_32] : memref<4xf32, #tpu.memory_space<smem>>
    %c2_33 = arith.constant 2 : index
    %106 = memref.load %arg4[%c2_33] : memref<4xf32, #tpu.memory_space<smem>>
    %107 = vector.broadcast %103 : f32 to vector<16x128xf32>
    %108 = arith.subf %0, %107 : vector<16x128xf32>
    %109 = vector.broadcast %104 : f32 to vector<16x128xf32>
    %110 = arith.mulf %108, %109 : vector<16x128xf32>
    %cst_34 = arith.constant -5.000000e-01 : f32
    %111 = vector.broadcast %cst_34 : f32 to vector<16x128xf32>
    %112 = arith.mulf %111, %110 : vector<16x128xf32>
    %113 = arith.mulf %112, %110 : vector<16x128xf32>
    %114 = math.exp %113 : vector<16x128xf32>
    %115 = vector.broadcast %106 : f32 to vector<16x128xf32>
    %116 = arith.mulf %115, %114 : vector<16x128xf32>
    %117 = arith.addf %67, %116 : vector<16x128xf32>
    %118 = math.absf %110 : vector<16x128xf32>
    %cst_35 = arith.constant 0.707106769 : f32
    %119 = vector.broadcast %cst_35 : f32 to vector<16x128xf32>
    %120 = arith.mulf %118, %119 : vector<16x128xf32>
    %cst_36 = arith.constant 0.327591091 : f32
    %121 = vector.broadcast %cst_36 : f32 to vector<16x128xf32>
    %122 = arith.mulf %121, %120 : vector<16x128xf32>
    %cst_37 = arith.constant 1.000000e+00 : f32
    %123 = vector.broadcast %cst_37 : f32 to vector<16x128xf32>
    %124 = arith.addf %123, %122 : vector<16x128xf32>
    %125 = tpu.reciprocal %124 {approx = true} : vector<16x128xf32> -> vector<16x128xf32>
    %126 = arith.mulf %124, %125 : vector<16x128xf32>
    %cst_38 = arith.constant 2.000000e+00 : f32
    %127 = vector.broadcast %cst_38 : f32 to vector<16x128xf32>
    %128 = arith.subf %127, %126 : vector<16x128xf32>
    %129 = arith.mulf %125, %128 : vector<16x128xf32>
    %cst_39 = arith.constant 0.53070271 : f32
    %130 = vector.broadcast %cst_39 : f32 to vector<16x128xf32>
    %131 = arith.mulf %130, %129 : vector<16x128xf32>
    %cst_40 = arith.constant -0.72657603 : f32
    %132 = vector.broadcast %cst_40 : f32 to vector<16x128xf32>
    %133 = arith.addf %131, %132 : vector<16x128xf32>
    %134 = arith.mulf %133, %129 : vector<16x128xf32>
    %cst_41 = arith.constant 0.710706889 : f32
    %135 = vector.broadcast %cst_41 : f32 to vector<16x128xf32>
    %136 = arith.addf %134, %135 : vector<16x128xf32>
    %137 = arith.mulf %136, %129 : vector<16x128xf32>
    %cst_42 = arith.constant -0.142248362 : f32
    %138 = vector.broadcast %cst_42 : f32 to vector<16x128xf32>
    %139 = arith.addf %137, %138 : vector<16x128xf32>
    %140 = arith.mulf %139, %129 : vector<16x128xf32>
    %cst_43 = arith.constant 0.127414793 : f32
    %141 = vector.broadcast %cst_43 : f32 to vector<16x128xf32>
    %142 = arith.addf %140, %141 : vector<16x128xf32>
    %143 = arith.mulf %142, %129 : vector<16x128xf32>
    %144 = vector.broadcast %105 : f32 to vector<16x128xf32>
    %145 = arith.mulf %144, %143 : vector<16x128xf32>
    %146 = arith.mulf %145, %114 : vector<16x128xf32>
    %cst_44 = arith.constant 0.000000e+00 : f32
    %147 = vector.broadcast %cst_44 : f32 to vector<16x128xf32>
    %148 = arith.cmpf oge, %110, %147 : vector<16x128xf32>
    %149 = vector.broadcast %105 : f32 to vector<16x128xf32>
    %150 = arith.subf %149, %146 : vector<16x128xf32>
    %151 = arith.select %148, %150, %146 : vector<16x128xi1>, vector<16x128xf32>
    %152 = arith.addf %102, %151 : vector<16x128xf32>
    %c3 = arith.constant 3 : index
    %153 = memref.load %arg1[%c3] : memref<4xf32, #tpu.memory_space<smem>>
    %c3_45 = arith.constant 3 : index
    %154 = memref.load %arg2[%c3_45] : memref<4xf32, #tpu.memory_space<smem>>
    %c3_46 = arith.constant 3 : index
    %155 = memref.load %arg3[%c3_46] : memref<4xf32, #tpu.memory_space<smem>>
    %c3_47 = arith.constant 3 : index
    %156 = memref.load %arg4[%c3_47] : memref<4xf32, #tpu.memory_space<smem>>
    %157 = vector.broadcast %153 : f32 to vector<16x128xf32>
    %158 = arith.subf %0, %157 : vector<16x128xf32>
    %159 = vector.broadcast %154 : f32 to vector<16x128xf32>
    %160 = arith.mulf %158, %159 : vector<16x128xf32>
    %cst_48 = arith.constant -5.000000e-01 : f32
    %161 = vector.broadcast %cst_48 : f32 to vector<16x128xf32>
    %162 = arith.mulf %161, %160 : vector<16x128xf32>
    %163 = arith.mulf %162, %160 : vector<16x128xf32>
    %164 = math.exp %163 : vector<16x128xf32>
    %165 = vector.broadcast %156 : f32 to vector<16x128xf32>
    %166 = arith.mulf %165, %164 : vector<16x128xf32>
    %167 = arith.addf %117, %166 : vector<16x128xf32>
    %168 = math.absf %160 : vector<16x128xf32>
    %cst_49 = arith.constant 0.707106769 : f32
    %169 = vector.broadcast %cst_49 : f32 to vector<16x128xf32>
    %170 = arith.mulf %168, %169 : vector<16x128xf32>
    %cst_50 = arith.constant 0.327591091 : f32
    %171 = vector.broadcast %cst_50 : f32 to vector<16x128xf32>
    %172 = arith.mulf %171, %170 : vector<16x128xf32>
    %cst_51 = arith.constant 1.000000e+00 : f32
    %173 = vector.broadcast %cst_51 : f32 to vector<16x128xf32>
    %174 = arith.addf %173, %172 : vector<16x128xf32>
    %175 = tpu.reciprocal %174 {approx = true} : vector<16x128xf32> -> vector<16x128xf32>
    %176 = arith.mulf %174, %175 : vector<16x128xf32>
    %cst_52 = arith.constant 2.000000e+00 : f32
    %177 = vector.broadcast %cst_52 : f32 to vector<16x128xf32>
    %178 = arith.subf %177, %176 : vector<16x128xf32>
    %179 = arith.mulf %175, %178 : vector<16x128xf32>
    %cst_53 = arith.constant 0.53070271 : f32
    %180 = vector.broadcast %cst_53 : f32 to vector<16x128xf32>
    %181 = arith.mulf %180, %179 : vector<16x128xf32>
    %cst_54 = arith.constant -0.72657603 : f32
    %182 = vector.broadcast %cst_54 : f32 to vector<16x128xf32>
    %183 = arith.addf %181, %182 : vector<16x128xf32>
    %184 = arith.mulf %183, %179 : vector<16x128xf32>
    %cst_55 = arith.constant 0.710706889 : f32
    %185 = vector.broadcast %cst_55 : f32 to vector<16x128xf32>
    %186 = arith.addf %184, %185 : vector<16x128xf32>
    %187 = arith.mulf %186, %179 : vector<16x128xf32>
    %cst_56 = arith.constant -0.142248362 : f32
    %188 = vector.broadcast %cst_56 : f32 to vector<16x128xf32>
    %189 = arith.addf %187, %188 : vector<16x128xf32>
    %190 = arith.mulf %189, %179 : vector<16x128xf32>
    %cst_57 = arith.constant 0.127414793 : f32
    %191 = vector.broadcast %cst_57 : f32 to vector<16x128xf32>
    %192 = arith.addf %190, %191 : vector<16x128xf32>
    %193 = arith.mulf %192, %179 : vector<16x128xf32>
    %194 = vector.broadcast %155 : f32 to vector<16x128xf32>
    %195 = arith.mulf %194, %193 : vector<16x128xf32>
    %196 = arith.mulf %195, %164 : vector<16x128xf32>
    %cst_58 = arith.constant 0.000000e+00 : f32
    %197 = vector.broadcast %cst_58 : f32 to vector<16x128xf32>
    %198 = arith.cmpf oge, %160, %197 : vector<16x128xf32>
    %199 = vector.broadcast %155 : f32 to vector<16x128xf32>
    %200 = arith.subf %199, %196 : vector<16x128xf32>
    %201 = arith.select %198, %200, %196 : vector<16x128xi1>, vector<16x128xf32>
    %202 = arith.addf %152, %201 : vector<16x128xf32>
    %c0_59 = arith.constant 0 : index
    %c0_60 = arith.constant 0 : index
    %203 = vector.load %arg6[%c0_59, %c0_60] : memref<16x128xf32, #tpu.memory_space<vmem>>, vector<16x128xf32>
    tpu.vector_store %arg6[%c0_59, %c0_60], %202 {strides = array<i32>} : memref<16x128xf32, #tpu.memory_space<vmem>>, vector<16x128xf32>,
    %204 = math.log %167 : vector<16x128xf32>
    %c0_61 = arith.constant 0 : index
    %c0_62 = arith.constant 0 : index
    %205 = vector.load %arg7[%c0_61, %c0_62] : memref<16x128xf32, #tpu.memory_space<vmem>>, vector<16x128xf32>
    tpu.vector_store %arg7[%c0_61, %c0_62], %204 {strides = array<i32>} : memref<16x128xf32, #tpu.memory_space<vmem>>, vector<16x128xf32>,
    return
  }
  func.func @transform_0(%arg0: i32) -> i32 {
    %c0_i32 = arith.constant 0 : i32
    %c0_i32_0 = arith.constant 0 : i32
    return %c0_i32 : i32
  }
  func.func @transform_1(%arg0: i32) -> i32 {
    %c0_i32 = arith.constant 0 : i32
    %c0_i32_0 = arith.constant 0 : i32
    return %c0_i32 : i32
  }
  func.func @transform_2(%arg0: i32) -> i32 {
    %c0_i32 = arith.constant 0 : i32
    %c0_i32_0 = arith.constant 0 : i32
    return %c0_i32 : i32
  }
  func.func @transform_3(%arg0: i32) -> i32 {
    %c0_i32 = arith.constant 0 : i32
    %c0_i32_0 = arith.constant 0 : i32
    return %c0_i32 : i32
  }
  func.func @transform_4(%arg0: i32) -> (i32, i32) {
    %c0_i32 = arith.constant 0 : i32
    %c0_i32_0 = arith.constant 0 : i32
    return %arg0, %c0_i32 : i32, i32
  }
  func.func @transform_5(%arg0: i32) -> (i32, i32) {
    %c0_i32 = arith.constant 0 : i32
    %c0_i32_0 = arith.constant 0 : i32
    return %arg0, %c0_i32 : i32, i32
  }
  func.func @transform_6(%arg0: i32) -> (i32, i32) {
    %c0_i32 = arith.constant 0 : i32
    %c0_i32_0 = arith.constant 0 : i32
    return %arg0, %c0_i32 : i32, i32
  }
}

</mosaic_0001>

<llo_original>
// kernel: flow1d_forward.1
$region0: #{flow1d_forward.1}
  #allocation0 [shape = 'u32[]', space=smem, size = 0x4, offset = 0x4, fixed_abs, tag = 'smem constant byte address 0x4 - core index']
  #allocation1 [shape = 'u32[144,128]{1,0:T(1,128)}', space=vmem, size = 0x12000, scoped, tag = 'internal scratch']
  %s0 = inlined_call_operand.vmem [shape: f32[4], index: 0, kind: input, shape index: {}]
  %s1 = inlined_call_operand.vmem [shape: f32[4], index: 1, kind: input, shape index: {}]
  %s2 = inlined_call_operand.vmem [shape: f32[4], index: 2, kind: input, shape index: {}]
  %s3 = inlined_call_operand.vmem [shape: f32[4], index: 3, kind: input, shape index: {}]
  %s4 = inlined_call_operand.vmem [shape: f32[16,128], index: 4, kind: input, shape index: {}]
  %s5 = inlined_call_operand.hbm [shape: f32[16,128], index: 5, kind: output, shape index: {0}]
  %s6 = inlined_call_operand.hbm [shape: f32[16,128], index: 6, kind: output, shape index: {1}]
  %7 = xla_tuple %s5, %s6
  %s8 = sld [smem:[#allocation0]]
  $region54: #{flow1d_forward.1} parent=0
    _
  %s10 = ssub.s32 1, %s8
  %s11 = scalar_select 0, %s10, %s8
  $region1: #{flow1d_forward.1} parent=0
    #allocation2 [shape = 'u8[512]{0}', space=smem, size = 0x200, scoped, tag = 'input window, operand 0, single buffered']
    #allocation3 [shape = 's32[1]{0}', space=sflag, size = 0x4, scoped, tag = 'scoped memory for flow1d_forward.1']
    #allocation4 [shape = 's32[1]{0}', space=sflag, size = 0x4, scoped, tag = 'scoped memory for flow1d_forward.1']
    #allocation5 [shape = 'u8[512]{0}', space=smem, size = 0x200, scoped, tag = 'input window, operand 1, single buffered']
    #allocation6 [shape = 's32[1]{0}', space=sflag, size = 0x4, scoped, tag = 'scoped memory for flow1d_forward.1']
    #allocation7 [shape = 'u8[512]{0}', space=smem, size = 0x200, scoped, tag = 'input window, operand 2, single buffered']
    #allocation8 [shape = 'u8[512]{0}', space=smem, size = 0x200, scoped, tag = 'input window, operand 3, single buffered']
    #allocation9 [shape = 's32[1]{0}', space=sflag, size = 0x4, scoped, tag = 'scoped memory for flow1d_forward.1']
    #allocation10 [shape = 'u8[8192]{0}', space=vmem, size = 0x2000, scoped, tag = 'output window, operand 0, single buffered']
    #allocation11 [shape = 'u8[8192]{0}', space=vmem, size = 0x2000, scoped, tag = 'output window, operand 1, single buffered']
    #allocation12 [shape = 's32[1]{0}', space=sflag, size = 0x4, scoped, tag = 'scoped memory for flow1d_forward.1']
    %12 = vsyncpa [#allocation4], 0
    %13 = vsyncpa [#allocation6], 0
    %14 = vsyncpa [#allocation9], 0
    %15 = vsyncpa [#allocation3], 0
    %16 = vsyncpa [#allocation12], 0
    // Predicated region
    $region2: #{flow1d_forward.1} parent=1 // pred_check
      _
    $region3: #{flow1d_forward.1} parent=1 // pred_check_branch
      %18 = sbr.rel (0) target = $region5
    $region4: #{flow1d_forward.1} parent=1 // pred_region
      %s20 = ssub.s32 16, 16
      %21 = vsyncadd [#allocation4], %s20
      %s23 = sshll.u32 %s0, 4
      %s24 = int_to_ptr.vmem [resolvable:$true] %s23
      %26 = dma.vmem_to_smem %s24, 16, [#allocation2], [#allocation4]
    $region5: #{flow1d_forward.1} parent=1 // pred_fallthru
      _
    // Predicated region
    $region6: #{flow1d_forward.1} parent=1 // pred_check
      _
    $region7: #{flow1d_forward.1} parent=1 // pred_check_branch
      %28 = sbr.rel (0) target = $region9
    $region8: #{flow1d_forward.1} parent=1 // pred_region
      %s30 = ssub.s32 16, 16
      %31 = vsyncadd [#allocation6], %s30
      %s33 = sshll.u32 %s1, 4
      %s34 = int_to_ptr.vmem [resolvable:$true] %s33
      %36 = dma.vmem_to_smem %s34, 16, [#allocation5], [#allocation6]
    $region9: #{flow1d_forward.1} parent=1 // pred_fallthru
      _
    // Predicated region
    $region10: #{flow1d_forward.1} parent=1 // pred_check
      _
    $region11: #{flow1d_forward.1} parent=1 // pred_check_branch
      %38 = sbr.rel (0) target = $region13
    $region12: #{flow1d_forward.1} parent=1 // pred_region
      %s40 = ssub.s32 16, 16
      %41 = vsyncadd [#allocation6], %s40
      %s43 = sshll.u32 %s2, 4
      %s44 = int_to_ptr.vmem [resolvable:$true] %s43
      %46 = dma.vmem_to_smem %s44, 16, [#allocation7], [#allocation6]
    $region13: #{flow1d_forward.1} parent=1 // pred_fallthru
      _
    // Predicated region
    $region14: #{flow1d_forward.1} parent=1 // pred_check
      _
    $region15: #{flow1d_forward.1} parent=1 // pred_check_branch
      %48 = sbr.rel (0) target = $region17
    $region16: #{flow1d_forward.1} parent=1 // pred_region
      %s50 = ssub.s32 16, 16
      %51 = vsyncadd [#allocation9], %s50
      %s53 = sshll.u32 %s3, 4
      %s54 = int_to_ptr.vmem [resolvable:$true] %s53
      %56 = dma.vmem_to_smem %s54, 16, [#allocation8], [#allocation9]
    $region17: #{flow1d_forward.1} parent=1 // pred_fallthru
      _
    // Predicated region
    $region18: #{flow1d_forward.1} parent=1 // pred_check
      _
    $region19: #{flow1d_forward.1} parent=1 // pred_check_branch
      %58 = sbr.rel (0) target = $region21
    $region20: #{flow1d_forward.1} parent=1 // pred_region
      _
    $region21: #{flow1d_forward.1} parent=1 // pred_fallthru
      _
    // Predicated region
    $region22: #{flow1d_forward.1} parent=1 // pred_check
      _
    $region23: #{flow1d_forward.1} parent=1 // pred_check_branch
      %60 = sbr.rel (0) target = $region25
    $region24: #{flow1d_forward.1} parent=1 // pred_region
      %61 = dma.done [#allocation4], 16
    $region25: #{flow1d_forward.1} parent=1 // pred_fallthru
      _
    // Predicated region
    $region26: #{flow1d_forward.1} parent=1 // pred_check
      _
    $region27: #{flow1d_forward.1} parent=1 // pred_check_branch
      %63 = sbr.rel (0) target = $region29
    $region28: #{flow1d_forward.1} parent=1 // pred_region
      %64 = dma.done [#allocation6], 16
    $region29: #{flow1d_forward.1} parent=1 // pred_fallthru
      _
    // Predicated region
    $region30: #{flow1d_forward.1} parent=1 // pred_check
      _
    $region31: #{flow1d_forward.1} parent=1 // pred_check_branch
      %66 = sbr.rel (0) target = $region33
    $region32: #{flow1d_forward.1} parent=1 // pred_region
      %67 = dma.done [#allocation6], 16
    $region33: #{flow1d_forward.1} parent=1 // pred_fallthru
      _
    // Predicated region
    $region34: #{flow1d_forward.1} parent=1 // pred_check
      _
    $region35: #{flow1d_forward.1} parent=1 // pred_check_branch
      %69 = sbr.rel (0) target = $region37
    $region36: #{flow1d_forward.1} parent=1 // pred_region
      %70 = dma.done [#allocation9], 16
    $region37: #{flow1d_forward.1} parent=1 // pred_fallthru
      _
    %71 = sfence
    %v72 = vld [vmem:[%s4] sm:$0xff]
    %v73 = vld [vmem:[%s4 + $0x8] sm:$0xff]
    %s74 = sld [smem:[#allocation2]]
    %s75 = sld [smem:[#allocation5]]
    %s76 = sld [smem:[#allocation7]]
    %s77 = sld [smem:[#allocation8]]
    %v78 = vstv %s74
    %v79 = vsub.f32 %v72, %v78
    %v80 = vsub.f32 %v73, %v78
    %v81 = vstv %s75
    %v82 = vmul.f32 %v79, %v81
    %v83 = vmul.f32 %v80, %v81
    %v84 = vmul.f32 %v82, -0.5
    %v85 = vmul.f32 %v83, -0.5
    %v86 = vmul.f32 %v84, %v82
    %v87 = vmul.f32 %v85, %v83
    %v88 = vmul.f32 %v86, 1.442695
    %v89 = vpow.pop %v88
    %v90 = vmul.f32 %v87, 1.442695
    %v91 = vpow.pop %v90
    %v92 = vstv %s77
    %v93 = vmul.f32 %v92, %v89
    %v94 = vmul.f32 %v92, %v91
    %v95 = vadd.f32 %v93, 0.0
    %v96 = vadd.f32 %v94, 0.0
    %v97 = vand.u32 2147483647, %v82
    %v98 = vand.u32 2147483647, %v83
    %v99 = vmul.f32 %v97, 0.70710677
    %v100 = vmul.f32 %v98, 0.70710677
    %v101 = vmul.f32 %v99, 0.3275911
    %v102 = vmul.f32 %v100, 0.3275911
    %v103 = vadd.f32 %v101, 1.0
    %v104 = vadd.f32 %v102, 1.0
    %v105 = vrcp.pop %v103
    %v106 = vrcp.pop %v104
    %v107 = vmul.f32 %v103, %v105
    %v108 = vmul.f32 %v104, %v106
    %v109 = vsub.f32 2.0, %v107
    %v110 = vsub.f32 2.0, %v108
    %v111 = vmul.f32 %v105, %v109
    %v112 = vmul.f32 %v106, %v110
    %v113 = vmul.f32 %v111, 0.5307027
    %v114 = vmul.f32 %v112, 0.5307027
    %v115 = vadd.f32 %v113, -0.72657603
    %v116 = vadd.f32 %v114, -0.72657603
    %v117 = vmul.f32 %v115, %v111
    %v118 = vmul.f32 %v116, %v112
    %v119 = vadd.f32 %v117, 0.7107069
    %v120 = vadd.f32 %v118, 0.7107069
    %v121 = vmul.f32 %v119, %v111
    %v122 = vmul.f32 %v120, %v112
    %v123 = vadd.f32 %v121, -0.14224836
    %v124 = vadd.f32 %v122, -0.14224836
    %v125 = vmul.f32 %v123, %v111
    %v126 = vmul.f32 %v124, %v112
    %v127 = vadd.f32 %v125, 0.1274148
    %v128 = vadd.f32 %v126, 0.1274148
    %v129 = vmul.f32 %v127, %v111
    %v130 = vmul.f32 %v128, %v112
    %v131 = vstv %s76
    %v132 = vmul.f32 %v131, %v129
    %v133 = vmul.f32 %v131, %v130
    %v134 = vmul.f32 %v132, %v89
    %v135 = vmul.f32 %v133, %v91
    %vm136 = vcmp.ge.f32.partialorder %v82, 0.0
    %vm137 = vcmp.ge.f32.partialorder %v83, 0.0
    %v138 = vsub.f32 %v131, %v134
    %v139 = vsub.f32 %v131, %v135
    %v140 = vsel %vm136, %v138, %v134
    %v141 = vsel %vm137, %v139, %v135
    %v142 = vadd.f32 %v140, 0.0
    %v143 = vadd.f32 %v141, 0.0
    %s144 = sld [smem:[#allocation2 + $0x1]]
    %s145 = sld [smem:[#allocation5 + $0x1]]
    %s146 = sld [smem:[#allocation7 + $0x1]]
    %s147 = sld [smem:[#allocation8 + $0x1]]
    %v148 = vstv %s144
    %v149 = vsub.f32 %v72, %v148
    %v150 = vsub.f32 %v73, %v148
    %v151 = vstv %s145
    %v152 = vmul.f32 %v149, %v151
    %v153 = vmul.f32 %v150, %v151
    %v154 = vmul.f32 %v152, -0.5
    %v155 = vmul.f32 %v153, -0.5
    %v156 = vmul.f32 %v154, %v152
    %v157 = vmul.f32 %v155, %v153
    %v158 = vmul.f32 %v156, 1.442695
    %v159 = vpow.pop %v158
    %v160 = vmul.f32 %v157, 1.442695
    %v161 = vpow.pop %v160
    %v162 = vstv %s147
    %v163 = vmul.f32 %v162, %v159
    %v164 = vmul.f32 %v162, %v161
    %v165 = vadd.f32 %v95, %v163
    %v166 = vadd.f32 %v96, %v164
    %v167 = vand.u32 2147483647, %v152
    %v168 = vand.u32 2147483647, %v153
    %v169 = vmul.f32 %v167, 0.70710677
    %v170 = vmul.f32 %v168, 0.70710677
    %v171 = vmul.f32 %v169, 0.3275911
    %v172 = vmul.f32 %v170, 0.3275911
    %v173 = vadd.f32 %v171, 1.0
    %v174 = vadd.f32 %v172, 1.0
    %v175 = vrcp.pop %v173
    %v176 = vrcp.pop %v174
    %v177 = vmul.f32 %v173, %v175
    %v178 = vmul.f32 %v174, %v176
    %v179 = vsub.f32 2.0, %v177
    %v180 = vsub.f32 2.0, %v178
    %v181 = vmul.f32 %v175, %v179
    %v182 = vmul.f32 %v176, %v180
    %v183 = vmul.f32 %v181, 0.5307027
    %v184 = vmul.f32 %v182, 0.5307027
    %v185 = vadd.f32 %v183, -0.72657603
    %v186 = vadd.f32 %v184, -0.72657603
    %v187 = vmul.f32 %v185, %v181
    %v188 = vmul.f32 %v186, %v182
    %v189 = vadd.f32 %v187, 0.7107069
    %v190 = vadd.f32 %v188, 0.7107069
    %v191 = vmul.f32 %v189, %v181
    %v192 = vmul.f32 %v190, %v182
    %v193 = vadd.f32 %v191, -0.14224836
    %v194 = vadd.f32 %v192, -0.14224836
    %v195 = vmul.f32 %v193, %v181
    %v196 = vmul.f32 %v194, %v182
    %v197 = vadd.f32 %v195, 0.1274148
    %v198 = vadd.f32 %v196, 0.1274148
    %v199 = vmul.f32 %v197, %v181
    %v200 = vmul.f32 %v198, %v182
    %v201 = vstv %s146
    %v202 = vmul.f32 %v201, %v199
    %v203 = vmul.f32 %v201, %v200
    %v204 = vmul.f32 %v202, %v159
    %v205 = vmul.f32 %v203, %v161
    %vm206 = vcmp.ge.f32.partialorder %v152, 0.0
    %vm207 = vcmp.ge.f32.partialorder %v153, 0.0
    %v208 = vsub.f32 %v201, %v204
    %v209 = vsub.f32 %v201, %v205
    %v210 = vsel %vm206, %v208, %v204
    %v211 = vsel %vm207, %v209, %v205
    %v212 = vadd.f32 %v142, %v210
    %v213 = vadd.f32 %v143, %v211
    %s214 = sld [smem:[#allocation2 + $0x2]]
    %s215 = sld [smem:[#allocation5 + $0x2]]
    %s216 = sld [smem:[#allocation7 + $0x2]]
    %s217 = sld [smem:[#allocation8 + $0x2]]
    %v218 = vstv %s214
    %v219 = vsub.f32 %v72, %v218
    %v220 = vsub.f32 %v73, %v218
    %v221 = vstv %s215
    %v222 = vmul.f32 %v219, %v221
    %v223 = vmul.f32 %v220, %v221
    %v224 = vmul.f32 %v222, -0.5
    %v225 = vmul.f32 %v223, -0.5
    %v226 = vmul.f32 %v224, %v222
    %v227 = vmul.f32 %v225, %v223
    %v228 = vmul.f32 %v226, 1.442695
    %v229 = vpow.pop %v228
    %v230 = vmul.f32 %v227, 1.442695
    %v231 = vpow.pop %v230
    %v232 = vstv %s217
    %v233 = vmul.f32 %v232, %v229
    %v234 = vmul.f32 %v232, %v231
    %v235 = vadd.f32 %v165, %v233
    %v236 = vadd.f32 %v166, %v234
    %v237 = vand.u32 2147483647, %v222
    %v238 = vand.u32 2147483647, %v223
    %v239 = vmul.f32 %v237, 0.70710677
    %v240 = vmul.f32 %v238, 0.70710677
    %v241 = vmul.f32 %v239, 0.3275911
    %v242 = vmul.f32 %v240, 0.3275911
    %v243 = vadd.f32 %v241, 1.0
    %v244 = vadd.f32 %v242, 1.0
    %v245 = vrcp.pop %v243
    %v246 = vrcp.pop %v244
    %v247 = vmul.f32 %v243, %v245
    %v248 = vmul.f32 %v244, %v246
    %v249 = vsub.f32 2.0, %v247
    %v250 = vsub.f32 2.0, %v248
    %v251 = vmul.f32 %v245, %v249
    %v252 = vmul.f32 %v246, %v250
    %v253 = vmul.f32 %v251, 0.5307027
    %v254 = vmul.f32 %v252, 0.5307027
    %v255 = vadd.f32 %v253, -0.72657603
    %v256 = vadd.f32 %v254, -0.72657603
    %v257 = vmul.f32 %v255, %v251
    %v258 = vmul.f32 %v256, %v252
    %v259 = vadd.f32 %v257, 0.7107069
    %v260 = vadd.f32 %v258, 0.7107069
    %v261 = vmul.f32 %v259, %v251
    %v262 = vmul.f32 %v260, %v252
    %v263 = vadd.f32 %v261, -0.14224836
    %v264 = vadd.f32 %v262, -0.14224836
    %v265 = vmul.f32 %v263, %v251
    %v266 = vmul.f32 %v264, %v252
    %v267 = vadd.f32 %v265, 0.1274148
    %v268 = vadd.f32 %v266, 0.1274148
    %v269 = vmul.f32 %v267, %v251
    %v270 = vmul.f32 %v268, %v252
    %v271 = vstv %s216
    %v272 = vmul.f32 %v271, %v269
    %v273 = vmul.f32 %v271, %v270
    %v274 = vmul.f32 %v272, %v229
    %v275 = vmul.f32 %v273, %v231
    %vm276 = vcmp.ge.f32.partialorder %v222, 0.0
    %vm277 = vcmp.ge.f32.partialorder %v223, 0.0
    %v278 = vsub.f32 %v271, %v274
    %v279 = vsub.f32 %v271, %v275
    %v280 = vsel %vm276, %v278, %v274
    %v281 = vsel %vm277, %v279, %v275
    %v282 = vadd.f32 %v212, %v280
    %v283 = vadd.f32 %v213, %v281
    %s284 = sld [smem:[#allocation2 + $0x3]]
    %s285 = sld [smem:[#allocation5 + $0x3]]
    %s286 = sld [smem:[#allocation7 + $0x3]]
    %s287 = sld [smem:[#allocation8 + $0x3]]
    %v288 = vstv %s284
    %v289 = vsub.f32 %v72, %v288
    %v290 = vsub.f32 %v73, %v288
    %v291 = vstv %s285
    %v292 = vmul.f32 %v289, %v291
    %v293 = vmul.f32 %v290, %v291
    %v294 = vmul.f32 %v292, -0.5
    %v295 = vmul.f32 %v293, -0.5
    %v296 = vmul.f32 %v294, %v292
    %v297 = vmul.f32 %v295, %v293
    %v298 = vmul.f32 %v296, 1.442695
    %v299 = vpow.pop %v298
    %v300 = vmul.f32 %v297, 1.442695
    %v301 = vpow.pop %v300
    %v302 = vstv %s287
    %v303 = vmul.f32 %v302, %v299
    %v304 = vmul.f32 %v302, %v301
    %v305 = vadd.f32 %v235, %v303
    %v306 = vadd.f32 %v236, %v304
    %v307 = vand.u32 2147483647, %v292
    %v308 = vand.u32 2147483647, %v293
    %v309 = vmul.f32 %v307, 0.70710677
    %v310 = vmul.f32 %v308, 0.70710677
    %v311 = vmul.f32 %v309, 0.3275911
    %v312 = vmul.f32 %v310, 0.3275911
    %v313 = vadd.f32 %v311, 1.0
    %v314 = vadd.f32 %v312, 1.0
    %v315 = vrcp.pop %v313
    %v316 = vrcp.pop %v314
    %v317 = vmul.f32 %v313, %v315
    %v318 = vmul.f32 %v314, %v316
    %v319 = vsub.f32 2.0, %v317
    %v320 = vsub.f32 2.0, %v318
    %v321 = vmul.f32 %v315, %v319
    %v322 = vmul.f32 %v316, %v320
    %v323 = vmul.f32 %v321, 0.5307027
    %v324 = vmul.f32 %v322, 0.5307027
    %v325 = vadd.f32 %v323, -0.72657603
    %v326 = vadd.f32 %v324, -0.72657603
    %v327 = vmul.f32 %v325, %v321
    %v328 = vmul.f32 %v326, %v322
    %v329 = vadd.f32 %v327, 0.7107069
    %v330 = vadd.f32 %v328, 0.7107069
    %v331 = vmul.f32 %v329, %v321
    %v332 = vmul.f32 %v330, %v322
    %v333 = vadd.f32 %v331, -0.14224836
    %v334 = vadd.f32 %v332, -0.14224836
    %v335 = vmul.f32 %v333, %v321
    %v336 = vmul.f32 %v334, %v322
    %v337 = vadd.f32 %v335, 0.1274148
    %v338 = vadd.f32 %v336, 0.1274148
    %v339 = vmul.f32 %v337, %v321
    %v340 = vmul.f32 %v338, %v322
    %v341 = vstv %s286
    %v342 = vmul.f32 %v341, %v339
    %v343 = vmul.f32 %v341, %v340
    %v344 = vmul.f32 %v342, %v299
    %v345 = vmul.f32 %v343, %v301
    %vm346 = vcmp.ge.f32.partialorder %v292, 0.0
    %vm347 = vcmp.ge.f32.partialorder %v293, 0.0
    %v348 = vsub.f32 %v341, %v344
    %v349 = vsub.f32 %v341, %v345
    %v350 = vsel %vm346, %v348, %v344
    %v351 = vsel %vm347, %v349, %v345
    %v352 = vadd.f32 %v282, %v350
    %v353 = vadd.f32 %v283, %v351
    %354 = vst [vmem:[#allocation10] sm:$0xff] %v352
    %355 = vst [vmem:[#allocation10 + $0x8] sm:$0xff] %v353
    %v356 = vlog2.pop %v305
    %v357 = vmul.f32 %v356, 0.6931472
    %v358 = vlog2.pop %v306
    %v359 = vmul.f32 %v358, 0.6931472
    %360 = vst [vmem:[#allocation11] sm:$0xff] %v357
    %361 = vst [vmem:[#allocation11 + $0x8] sm:$0xff] %v359
    // Predicated region
    $region38: #{flow1d_forward.1} parent=1 // pred_check
      _
    $region39: #{flow1d_forward.1} parent=1 // pred_check_branch
      %363 = sbr.rel (0) target = $region41
    $region40: #{flow1d_forward.1} parent=1 // pred_region
      %s365 = ssub.s32 256, 256
      %366 = vsyncadd [#allocation3], %s365
      %s367 = sshll.u32 [#allocation10], 4
      %s368 = int_to_ptr.vmem [resolvable:$true] %s367
      %373 = dma.vmem_to_hbm [thread:$0]  %s368, 256, %s5, [#allocation3], 128, 128, 8
    $region41: #{flow1d_forward.1} parent=1 // pred_fallthru
      _
    // Predicated region
    $region42: #{flow1d_forward.1} parent=1 // pred_check
      _
    $region43: #{flow1d_forward.1} parent=1 // pred_check_branch
      %375 = sbr.rel (0) target = $region45
    $region44: #{flow1d_forward.1} parent=1 // pred_region
      %s377 = ssub.s32 256, 256
      %378 = vsyncadd [#allocation12], %s377
      %s379 = sshll.u32 [#allocation11], 4
      %s380 = int_to_ptr.vmem [resolvable:$true] %s379
      %385 = dma.vmem_to_hbm [thread:$0]  %s380, 256, %s6, [#allocation12], 128, 128, 8
    $region45: #{flow1d_forward.1} parent=1 // pred_fallthru
      _
    // Predicated region
    $region46: #{flow1d_forward.1} parent=1 // pred_check
      _
    $region47: #{flow1d_forward.1} parent=1 // pred_check_branch
      %387 = sbr.rel (0) target = $region49
    $region48: #{flow1d_forward.1} parent=1 // pred_region
      %388 = dma.done [#allocation3], 256
    $region49: #{flow1d_forward.1} parent=1 // pred_fallthru
      _
    // Predicated region
    $region50: #{flow1d_forward.1} parent=1 // pred_check
      _
    $region51: #{flow1d_forward.1} parent=1 // pred_check_branch
      %390 = sbr.rel (0) target = $region53
    $region52: #{flow1d_forward.1} parent=1 // pred_region
      %391 = dma.done [#allocation12], 256
    $region53: #{flow1d_forward.1} parent=1 // pred_fallthru
      _
    %392 = vsyncpa [#allocation3], 1
    %393 = vsyncpa [#allocation12], 1
    %394 = vsyncpa [#allocation4], 1
    %395 = vsyncpa [#allocation6], 1
    %396 = vsyncpa [#allocation9], 1

</llo_original>
